<compile_context>
chip_gen: v6e
topology: v6e:2x2x1
jax: 0.10.0
libtpu: 0.0.40
codegen_flags: <defaults>
</compile_context>

<pallas_src>
import functools

import jax
import jax.numpy as jnp
from jax.experimental import pallas as pl
from jax.experimental.pallas import tpu as pltpu


def _mlp_grad_kernel(xt_ref, n_ref, w0x_ref, w0n_ref, b0_ref,
                     w1_ref, b1_ref, w2_ref, b2_ref, out_ref):
    # Batch-on-lanes layout: activations are [features, TB] (TB on 128 lanes).
    # Layer 0: x tile is already [d_x, TB], so this is a plain MXU matmul
    # (no in-kernel transpose).
    z0t = jnp.dot(w0x_ref[...], xt_ref[...],
                  preferred_element_type=jnp.float32)           # [H, TB]
    # n-column of W0: cheap VPU broadcast-multiply, plus bias.
    z0t = z0t + w0n_ref[...] * n_ref[...] + b0_ref[...]
    h0t = jnp.tanh(z0t)                                         # [H, TB]
    h1t = jnp.tanh(
        jnp.dot(w1_ref[...], h0t, preferred_element_type=jnp.float32)
        + b1_ref[...])                                          # [H, TB]
    outt = (jnp.dot(w2_ref[...], h1t, preferred_element_type=jnp.float32)
            + b2_ref[...])                                      # [d_out, TB]
    out_ref[...] = outt.astype(out_ref.dtype)


@functools.partial(jax.jit, static_argnames=("block_b",))
def mlp_grad_forward(n, x, params, *, block_b=None):
    """n: [B, 1], x: [B, d_x] -> [B, d_out].

    params are in PyTorch nn.Linear layout: w [out, in], b [out], where the
    first layer's `in` dim is d_x + 1 (n is prepended, matching MLPGrad).

    block_b=None (default) -> a single grid step covering the whole batch
    (best for single-TensorCore v5e/v6e and for modest B on v7x).  If given,
    block_b must divide B and be a multiple of 128 (lane-dense tiles).
    """
    w0, b0, w1, b1, w2, b2 = params
    B, d_x = x.shape
    H = w0.shape[0]
    d_out = w2.shape[0]

    if block_b is None:
        block_b = B                       # single grid step, no padding needed
    assert B % block_b == 0, "block_b must divide the batch size"
    assert block_b == B or block_b % 128 == 0, (
        "block_b must be the full batch or a multiple of 128")

    # Split W0: column 0 multiplies the scalar n, the rest multiplies x.
    w0n = w0[:, :1]                       # [H, 1]
    w0x = w0[:, 1:]                       # [H, d_x]
    b0c = b0.reshape(H, 1)
    b1c = b1.reshape(H, 1)
    b2c = b2.reshape(d_out, 1)

    # Lane-dense (batch-on-lanes) inputs.  Tiny wrapper glue: d_x*B floats.
    x_t = x.T                             # [d_x, B]
    n_row = n.reshape(1, B)               # [1, B]

    grid = (B // block_b,)

    out_t = pl.pallas_call(
        _mlp_grad_kernel,
        out_shape=jax.ShapeDtypeStruct((d_out, B), x.dtype),
        grid_spec=pltpu.PrefetchScalarGridSpec(
            num_scalar_prefetch=0,
            grid=grid,
            in_specs=[
                pl.BlockSpec((d_x, block_b), lambda i: (0, i)),   # x^T tile
                pl.BlockSpec((1, block_b), lambda i: (0, i)),     # n row tile
                pl.BlockSpec((H, d_x), lambda i: (0, 0)),         # W0[:, 1:]
                pl.BlockSpec((H, 1), lambda i: (0, 0)),           # W0[:, :1]
                pl.BlockSpec((H, 1), lambda i: (0, 0)),           # b0
                pl.BlockSpec((H, H), lambda i: (0, 0)),           # W1
                pl.BlockSpec((H, 1), lambda i: (0, 0)),           # b1
                pl.BlockSpec((d_out, H), lambda i: (0, 0)),       # W2
                pl.BlockSpec((d_out, 1), lambda i: (0, 0)),       # b2
            ],
            out_specs=pl.BlockSpec((d_out, block_b), lambda i: (0, i)),
        ),
        compiler_params=pltpu.CompilerParams(
            dimension_semantics=("parallel",)),
    )(x_t, n_row, w0x, w0n, b0c, w1, b1c, w2, b2c)

    # Back to the module's [B, d_out] layout (tiny: B * d_out floats).
    return out_t.T


def init_mlp_grad_params(key, input_dim, output_dim, hidden_dim=20):
    """nn.Linear-style init, PyTorch layout: w [out, in], b [out].

    input_dim is the x feature dim; the module uses input_dim + 1 (n column).
    """
    d_in = input_dim + 1
    dims = [(d_in, hidden_dim), (hidden_dim, hidden_dim),
            (hidden_dim, output_dim)]
    params = []
    for fan_in, fan_out in dims:
        key, kw, kb = jax.random.split(key, 3)
        bound = 1.0 / jnp.sqrt(jnp.float32(fan_in))
        w = jax.random.uniform(kw, (fan_out, fan_in), jnp.float32,
                               minval=-bound, maxval=bound)
        b = jax.random.uniform(kb, (fan_out,), jnp.float32,
                               minval=-bound, maxval=bound)
        params += [w, b]
    return tuple(params)


def _reference_forward(n, x, params):
    w0, b0, w1, b1, w2, b2 = params
    inp = jnp.concatenate([n, x], axis=1)
    h = jnp.tanh(inp @ w0.T + b0)
    h = jnp.tanh(h @ w1.T + b1)
    return h @ w2.T + b2


if __name__ == "__main__":
    key = jax.random.PRNGKey(0)
    k_param, k_n, k_x = jax.random.split(key, 3)

    batch = 128          # single grid step (block_b defaults to the full batch)
    input_dim = 7        # x features; the MLP sees input_dim + 1 = 8
    output_dim = 4
    hidden_dim = 32

    params = init_mlp_grad_params(k_param, input_dim, output_dim, hidden_dim)
    n = jax.random.normal(k_n, (batch, 1), jnp.float32)
    x = jax.random.normal(k_x, (batch, input_dim), jnp.float32)

    out = mlp_grad_forward(n, x, params)
    out = jax.block_until_ready(out)

    ref = _reference_forward(n, x, params)
    assert out.shape == (batch, output_dim)
    assert jnp.allclose(out, ref, atol=2e-5, rtol=2e-5), "mismatch vs reference"

    print("KERNEL_OK")
</pallas_src>

<mosaic_0001>
module attributes {stable_mosaic.version = 11 : i64} {
  func.func @_mlp_grad_kernel(%arg0: i32, %arg1: memref<7x128xf32, #tpu.memory_space<vmem>>, %arg2: memref<1x128xf32, #tpu.memory_space<vmem>>, %arg3: memref<32x7xf32, #tpu.memory_space<vmem>>, %arg4: memref<32x1xf32, #tpu.memory_space<vmem>>, %arg5: memref<32x1xf32, #tpu.memory_space<vmem>>, %arg6: memref<32x32xf32, #tpu.memory_space<vmem>>, %arg7: memref<32x1xf32, #tpu.memory_space<vmem>>, %arg8: memref<4x32xf32, #tpu.memory_space<vmem>>, %arg9: memref<4x1xf32, #tpu.memory_space<vmem>>, %arg10: memref<4x128xf32, #tpu.memory_space<vmem>>) attributes {dimension_semantics = [#tpu.dimension_semantics<parallel>], iteration_bounds = array<i64: 1>, scalar_prefetch = 0 : i64, scratch_operands = 0 : i64, tpu.core_type = #tpu.core_type<tc>, window_params = [{transform_indices = @transform_0, window_bounds = array<i64: 7, 128>}, {transform_indices = @transform_1, window_bounds = array<i64: 1, 128>}, {pipeline_mode = #tpu.pipeline_mode<synchronous>, transform_indices = @transform_2, window_bounds = array<i64: 32, 7>}, {pipeline_mode = #tpu.pipeline_mode<synchronous>, transform_indices = @transform_3, window_bounds = array<i64: 32, 1>}, {pipeline_mode = #tpu.pipeline_mode<synchronous>, transform_indices = @transform_4, window_bounds = array<i64: 32, 1>}, {pipeline_mode = #tpu.pipeline_mode<synchronous>, transform_indices = @transform_5, window_bounds = array<i64: 32, 32>}, {pipeline_mode = #tpu.pipeline_mode<synchronous>, transform_indices = @transform_6, window_bounds = array<i64: 32, 1>}, {pipeline_mode = #tpu.pipeline_mode<synchronous>, transform_indices = @transform_7, window_bounds = array<i64: 4, 32>}, {pipeline_mode = #tpu.pipeline_mode<synchronous>, transform_indices = @transform_8, window_bounds = array<i64: 4, 1>}, {transform_indices = @transform_9, window_bounds = array<i64: 4, 128>}]} {
    %c0 = arith.constant 0 : index
    %c0_0 = arith.constant 0 : index
    %0 = vector.load %arg3[%c0, %c0_0] : memref<32x7xf32, #tpu.memory_space<vmem>>, vector<32x7xf32>
    %c0_1 = arith.constant 0 : index
    %c0_2 = arith.constant 0 : index
    %1 = vector.load %arg1[%c0_1, %c0_2] : memref<7x128xf32, #tpu.memory_space<vmem>>, vector<7x128xf32>
    %cst = arith.constant dense<0.000000e+00> : vector<32x128xf32>
    %2 = tpu.matmul %0, %1, %cst {dimension_numbers = #tpu.dot_dimension_numbers<[1], [0], [0], [1], [0, 0, 1, 1], [], []>} : vector<32x7xf32>, vector<7x128xf32>, vector<32x128xf32> -> vector<32x128xf32>
    %c0_3 = arith.constant 0 : index
    %c0_4 = arith.constant 0 : index
    %3 = vector.load %arg4[%c0_3, %c0_4] : memref<32x1xf32, #tpu.memory_space<vmem>>, vector<32x1xf32>
    %c0_5 = arith.constant 0 : index
    %c0_6 = arith.constant 0 : index
    %4 = vector.load %arg2[%c0_5, %c0_6] : memref<1x128xf32, #tpu.memory_space<vmem>>, vector<1x128xf32>
    %5 = vector.broadcast %3 : vector<32x1xf32> to vector<32x128xf32>
    %6 = vector.broadcast %4 : vector<1x128xf32> to vector<32x128xf32>
    %7 = arith.mulf %5, %6 : vector<32x128xf32>
    %8 = arith.addf %2, %7 : vector<32x128xf32>
    %c0_7 = arith.constant 0 : index
    %c0_8 = arith.constant 0 : index
    %9 = vector.load %arg5[%c0_7, %c0_8] : memref<32x1xf32, #tpu.memory_space<vmem>>, vector<32x1xf32>
    %10 = vector.broadcast %9 : vector<32x1xf32> to vector<32x128xf32>
    %11 = arith.addf %8, %10 : vector<32x128xf32>
    %12 = math.tanh %11 : vector<32x128xf32>
    %c0_9 = arith.constant 0 : index
    %c0_10 = arith.constant 0 : index
    %13 = vector.load %arg6[%c0_9, %c0_10] : memref<32x32xf32, #tpu.memory_space<vmem>>, vector<32x32xf32>
    %cst_11 = arith.constant dense<0.000000e+00> : vector<32x128xf32>
    %14 = tpu.matmul %13, %12, %cst_11 {dimension_numbers = #tpu.dot_dimension_numbers<[1], [0], [0], [1], [0, 0, 1, 1], [], []>} : vector<32x32xf32>, vector<32x128xf32>, vector<32x128xf32> -> vector<32x128xf32>
    %c0_12 = arith.constant 0 : index
    %c0_13 = arith.constant 0 : index
    %15 = vector.load %arg7[%c0_12, %c0_13] : memref<32x1xf32, #tpu.memory_space<vmem>>, vector<32x1xf32>
    %16 = vector.broadcast %15 : vector<32x1xf32> to vector<32x128xf32>
    %17 = arith.addf %14, %16 : vector<32x128xf32>
    %18 = math.tanh %17 : vector<32x128xf32>
    %c0_14 = arith.constant 0 : index
    %c0_15 = arith.constant 0 : index
    %19 = vector.load %arg8[%c0_14, %c0_15] : memref<4x32xf32, #tpu.memory_space<vmem>>, vector<4x32xf32>
    %cst_16 = arith.constant dense<0.000000e+00> : vector<4x128xf32>
    %20 = tpu.matmul %19, %18, %cst_16 {dimension_numbers = #tpu.dot_dimension_numbers<[1], [0], [0], [1], [0, 0, 1, 1], [], []>} : vector<4x32xf32>, vector<32x128xf32>, vector<4x128xf32> -> vector<4x128xf32>
    %c0_17 = arith.constant 0 : index
    %c0_18 = arith.constant 0 : index
    %21 = vector.load %arg9[%c0_17, %c0_18] : memref<4x1xf32, #tpu.memory_space<vmem>>, vector<4x1xf32>
    %22 = vector.broadcast %21 : vector<4x1xf32> to vector<4x128xf32>
    %23 = arith.addf %20, %22 : vector<4x128xf32>
    %c0_19 = arith.constant 0 : index
    %c0_20 = arith.constant 0 : index
    %24 = vector.load %arg10[%c0_19, %c0_20] : memref<4x128xf32, #tpu.memory_space<vmem>>, vector<4x128xf32>
    tpu.vector_store %arg10[%c0_19, %c0_20], %23 {strides = array<i32>} : memref<4x128xf32, #tpu.memory_space<vmem>>, vector<4x128xf32>,
    return
  }
  func.func @transform_0(%arg0: i32) -> (i32, i32) {
    %c0_i32 = arith.constant 0 : i32
    %c0_i32_0 = arith.constant 0 : i32
    return %c0_i32, %arg0 : i32, i32
  }
  func.func @transform_1(%arg0: i32) -> (i32, i32) {
    %c0_i32 = arith.constant 0 : i32
    %c0_i32_0 = arith.constant 0 : i32
    return %c0_i32, %arg0 : i32, i32
  }
  func.func @transform_2(%arg0: i32) -> (i32, i32) {
    %c0_i32 = arith.constant 0 : i32
    %c0_i32_0 = arith.constant 0 : i32
    %c0_i32_1 = arith.constant 0 : i32
    return %c0_i32, %c0_i32_0 : i32, i32
  }
  func.func @transform_3(%arg0: i32) -> (i32, i32) {
    %c0_i32 = arith.constant 0 : i32
    %c0_i32_0 = arith.constant 0 : i32
    %c0_i32_1 = arith.constant 0 : i32
    return %c0_i32, %c0_i32_0 : i32, i32
  }
  func.func @transform_4(%arg0: i32) -> (i32, i32) {
    %c0_i32 = arith.constant 0 : i32
    %c0_i32_0 = arith.constant 0 : i32
    %c0_i32_1 = arith.constant 0 : i32
    return %c0_i32, %c0_i32_0 : i32, i32
  }
  func.func @transform_5(%arg0: i32) -> (i32, i32) {
    %c0_i32 = arith.constant 0 : i32
    %c0_i32_0 = arith.constant 0 : i32
    %c0_i32_1 = arith.constant 0 : i32
    return %c0_i32, %c0_i32_0 : i32, i32
  }
  func.func @transform_6(%arg0: i32) -> (i32, i32) {
    %c0_i32 = arith.constant 0 : i32
    %c0_i32_0 = arith.constant 0 : i32
    %c0_i32_1 = arith.constant 0 : i32
    return %c0_i32, %c0_i32_0 : i32, i32
  }
  func.func @transform_7(%arg0: i32) -> (i32, i32) {
    %c0_i32 = arith.constant 0 : i32
    %c0_i32_0 = arith.constant 0 : i32
    %c0_i32_1 = arith.constant 0 : i32
    return %c0_i32, %c0_i32_0 : i32, i32
  }
  func.func @transform_8(%arg0: i32) -> (i32, i32) {
    %c0_i32 = arith.constant 0 : i32
    %c0_i32_0 = arith.constant 0 : i32
    %c0_i32_1 = arith.constant 0 : i32
    return %c0_i32, %c0_i32_0 : i32, i32
  }
  func.func @transform_9(%arg0: i32) -> (i32, i32) {
    %c0_i32 = arith.constant 0 : i32
    %c0_i32_0 = arith.constant 0 : i32
    return %c0_i32, %arg0 : i32, i32
  }
}

</mosaic_0001>

<llo_original>
// kernel: mlp_grad_forward.1
$region0: #{mlp_grad_forward.1}
  #allocation0 [shape = 'u32[]', space=smem, size = 0x4, offset = 0x4, fixed_abs, tag = 'smem constant byte address 0x4 - core index']
  #allocation1 [shape = 'u32[144,128]{1,0:T(1,128)}', space=vmem, size = 0x12000, scoped, tag = 'internal scratch']
  %s0 = inlined_call_operand.vmem [shape: f32[7,128], index: 0, kind: input, shape index: {}]
  %s1 = inlined_call_operand.vmem [shape: f32[1,128], index: 1, kind: input, shape index: {}]
  %s2 = inlined_call_operand.vmem [shape: f32[32,7], index: 2, kind: input, shape index: {}]
  %s3 = inlined_call_operand.vmem [shape: f32[32,1], index: 3, kind: input, shape index: {}]
  %s4 = inlined_call_operand.vmem [shape: f32[32,1], index: 4, kind: input, shape index: {}]
  %s5 = inlined_call_operand.vmem [shape: f32[32,32], index: 5, kind: input, shape index: {}]
  %s6 = inlined_call_operand.vmem [shape: f32[32,1], index: 6, kind: input, shape index: {}]
  %s7 = inlined_call_operand.vmem [shape: f32[4,32], index: 7, kind: input, shape index: {}]
  %s8 = inlined_call_operand.vmem [shape: f32[4,1], index: 8, kind: input, shape index: {}]
  %s9 = inlined_call_operand.hbm [shape: f32[4,128], index: 9, kind: output, shape index: {}]
  %s10 = sld [smem:[#allocation0]]
  $region46: #{mlp_grad_forward.1} parent=0
    _
  %s12 = ssub.s32 1, %s10
  %s13 = scalar_select 0, %s12, %s10
  $region1: #{mlp_grad_forward.1} parent=0
    #allocation2 [shape = 'u8[2048]{0}', space=vmem, size = 0x800, scoped, tag = 'output window, operand 0, single buffered']
    #allocation3 [shape = 's32[1]{0}', space=sflag, size = 0x4, scoped, tag = 'scoped memory for mlp_grad_forward.1']
    %14 = vsyncpa [#allocation3], 0
    // Predicated region
    $region2: #{mlp_grad_forward.1} parent=1 // pred_check
      _
    $region3: #{mlp_grad_forward.1} parent=1 // pred_check_branch
      %16 = sbr.rel (0) target = $region5
    $region4: #{mlp_grad_forward.1} parent=1 // pred_region
      _
    $region5: #{mlp_grad_forward.1} parent=1 // pred_fallthru
      _
    // Predicated region
    $region6: #{mlp_grad_forward.1} parent=1 // pred_check
      _
    $region7: #{mlp_grad_forward.1} parent=1 // pred_check_branch
      %18 = sbr.rel (0) target = $region9
    $region8: #{mlp_grad_forward.1} parent=1 // pred_region
      _
    $region9: #{mlp_grad_forward.1} parent=1 // pred_fallthru
      _
    // Predicated region
    $region10: #{mlp_grad_forward.1} parent=1 // pred_check
      _
    $region11: #{mlp_grad_forward.1} parent=1 // pred_check_branch
      %20 = sbr.rel (0) target = $region13
    $region12: #{mlp_grad_forward.1} parent=1 // pred_region
      _
    $region13: #{mlp_grad_forward.1} parent=1 // pred_fallthru
      _
    // Predicated region
    $region14: #{mlp_grad_forward.1} parent=1 // pred_check
      _
    $region15: #{mlp_grad_forward.1} parent=1 // pred_check_branch
      %22 = sbr.rel (0) target = $region17
    $region16: #{mlp_grad_forward.1} parent=1 // pred_region
      _
    $region17: #{mlp_grad_forward.1} parent=1 // pred_fallthru
      _
    // Predicated region
    $region18: #{mlp_grad_forward.1} parent=1 // pred_check
      _
    $region19: #{mlp_grad_forward.1} parent=1 // pred_check_branch
      %24 = sbr.rel (0) target = $region21
    $region20: #{mlp_grad_forward.1} parent=1 // pred_region
      _
    $region21: #{mlp_grad_forward.1} parent=1 // pred_fallthru
      _
    // Predicated region
    $region22: #{mlp_grad_forward.1} parent=1 // pred_check
      _
    $region23: #{mlp_grad_forward.1} parent=1 // pred_check_branch
      %26 = sbr.rel (0) target = $region25
    $region24: #{mlp_grad_forward.1} parent=1 // pred_region
      _
    $region25: #{mlp_grad_forward.1} parent=1 // pred_fallthru
      _
    // Predicated region
    $region26: #{mlp_grad_forward.1} parent=1 // pred_check
      _
    $region27: #{mlp_grad_forward.1} parent=1 // pred_check_branch
      %28 = sbr.rel (0) target = $region29
    $region28: #{mlp_grad_forward.1} parent=1 // pred_region
      _
    $region29: #{mlp_grad_forward.1} parent=1 // pred_fallthru
      _
    // Predicated region
    $region30: #{mlp_grad_forward.1} parent=1 // pred_check
      _
    $region31: #{mlp_grad_forward.1} parent=1 // pred_check_branch
      %30 = sbr.rel (0) target = $region33
    $region32: #{mlp_grad_forward.1} parent=1 // pred_region
      _
    $region33: #{mlp_grad_forward.1} parent=1 // pred_fallthru
      _
    // Predicated region
    $region34: #{mlp_grad_forward.1} parent=1 // pred_check
      _
    $region35: #{mlp_grad_forward.1} parent=1 // pred_check_branch
      %32 = sbr.rel (0) target = $region37
    $region36: #{mlp_grad_forward.1} parent=1 // pred_region
      _
    $region37: #{mlp_grad_forward.1} parent=1 // pred_fallthru
      _
    %v33 = vld [vmem:[%s2] sm:$0xff]
    %v34 = vld [vmem:[%s2 + $0x8] sm:$0xff]
    %v35 = vld [vmem:[%s2 + $0x10] sm:$0xff]
    %v36 = vld [vmem:[%s2 + $0x18] sm:$0xff]
    %v37 = vld [vmem:[%s0] sm:$0x7f]
    %v38 = vld [vmem:[%s3] sm:$0xff]
    %v39 = vld [vmem:[%s3 + $0x8] sm:$0xff]
    %v40 = vld [vmem:[%s3 + $0x10] sm:$0xff]
    %v41 = vld [vmem:[%s3 + $0x18] sm:$0xff]
    %v42 = vld [vmem:[%s1] sm:$0x1]
    %44 = vset.pattern.permute.xlu0 0
    %45 = vperm.xlu0 %44, %v38
    %v46 = vpop.permute.xlu0 %45
    %49 = vset.pattern.permute.xlu0 0
    %50 = vperm.xlu0 %49, %v39
    %v51 = vpop.permute.xlu0 %50
    %54 = vset.pattern.permute.xlu0 0
    %55 = vperm.xlu0 %54, %v40
    %v56 = vpop.permute.xlu0 %55
    %59 = vset.pattern.permute.xlu0 0
    %60 = vperm.xlu0 %59, %v41
    %v61 = vpop.permute.xlu0 %60
    %v64 = vlaneseq
    %v65 = vshrl.u32 %v64, 7
    %v66 = vsub.s32 0, %v65
    %v67 = vrot.slane %v42, %v66
    %v69 = vmul.f32 %v46, %v67
    %v70 = vmul.f32 %v51, %v67
    %v71 = vmul.f32 %v56, %v67
    %v72 = vmul.f32 %v61, %v67
    %vm73 = vcmask 56320
    %v75 = vsel %vm73, %v33, 0
    %v78 = vsel %vm73, %v34, 0
    %v81 = vsel %vm73, %v35, 0
    %v84 = vsel %vm73, %v36, 0
    %vm86 = vcmask 1046528
    %v88 = vsel %vm86, %v37, 0
    %90 = vmatprep.subr.mxu0 0.0
    %91 = vmatpush1.msra.mxu0 0.0
    %92 = vmatprep.subr.mxu0 0.0
    %93 = vmatpush1.msra.mxu0 0.0
    %94 = vmatprep.subr.mxu0 0.0
    %95 = vmatpush1.msra.mxu0 0.0
    %96 = vmatprep.subr.mxu0 0.0
    %97 = vmatpush1.msra.mxu0 0.0
    %98 = vmatprep.subr.mxu0 0.0
    %99 = vmatpush1.msra.mxu0 0.0
    %100 = vmatprep.subr.mxu0 0.0
    %101 = vmatpush1.msra.mxu0 0.0
    %102 = vmatprep.subr.mxu0 0.0
    %103 = vmatpush1.msra.mxu0 0.0
    %104 = vmatprep.subr.mxu0 0.0
    %105 = vmatpush1.msra.mxu0 0.0
    %106 = vmatprep.subr.mxu0 0.0
    %107 = vmatpush1.msra.mxu0 0.0
    %108 = vmatprep.subr.mxu0 0.0
    %109 = vmatpush1.msra.mxu0 0.0
    %110 = vmatprep.subr.mxu0 0.0
    %111 = vmatpush1.msra.mxu0 0.0
    %112 = vmatprep.subr.mxu0 0.0
    %113 = vmatpush1.msra.mxu0 0.0
    %114 = vmatprep.subr.mxu0 0.0
    %115 = vmatpush1.msra.mxu0 0.0
    %116 = vmatprep.subr.mxu0 0.0
    %117 = vmatpush1.msra.mxu0 0.0
    %118 = vmatprep.subr.mxu0 0.0
    %119 = vmatpush1.msra.mxu0 0.0
    %120 = vmatprep.subr.mxu0 0.0
    %121 = vmatpush1.msra.mxu0 %v88
    %122 = vmatprep.subr.mxu0 0.0
    %123 = vmatpush2.msra.mxu0 0.0
    %124 = vmatprep.subr.mxu0 0.0
    %125 = vmatpush2.msra.mxu0 0.0
    %126 = vmatprep.subr.mxu0 0.0
    %127 = vmatpush2.msra.mxu0 0.0
    %128 = vmatprep.subr.mxu0 0.0
    %129 = vmatpush2.msra.mxu0 0.0
    %130 = vmatprep.subr.mxu0 0.0
    %131 = vmatpush2.msra.mxu0 0.0
    %132 = vmatprep.subr.mxu0 0.0
    %133 = vmatpush2.msra.mxu0 0.0
    %134 = vmatprep.subr.mxu0 0.0
    %135 = vmatpush2.msra.mxu0 0.0
    %136 = vmatprep.subr.mxu0 0.0
    %137 = vmatpush2.msra.mxu0 0.0
    %138 = vmatprep.subr.mxu0 0.0
    %139 = vmatpush2.msra.mxu0 0.0
    %140 = vmatprep.subr.mxu0 0.0
    %141 = vmatpush2.msra.mxu0 0.0
    %142 = vmatprep.subr.mxu0 0.0
    %143 = vmatpush2.msra.mxu0 0.0
    %144 = vmatprep.subr.mxu0 0.0
    %145 = vmatpush2.msra.mxu0 0.0
    %146 = vmatprep.subr.mxu0 0.0
    %147 = vmatpush2.msra.mxu0 0.0
    %148 = vmatprep.subr.mxu0 0.0
    %149 = vmatpush2.msra.mxu0 0.0
    %150 = vmatprep.subr.mxu0 0.0
    %151 = vmatpush2.msra.mxu0 0.0
    %152 = vmatprep.subr.mxu0 0.0
    %153 = vmatpush2.msra.mxu0 0.0
    %154 = vmatprep.mubr.f32.mxu0 0.0
    %155 = vmatmul.mubr.f32.gmra.mxu0 %v75
    %v156 = vpop.f32.mrf.mxu0
    %v157 = vadd.f32 %v69, %v156
    %v158 = vpop.f32.mrf.mxu0
    %159 = vmatprep.mubr.f32.mxu0 0.0
    %160 = vmatmul.mubr.f32.gmra.mxu0 %v78
    %v161 = vpop.f32.mrf.mxu0
    %v162 = vadd.f32 %v70, %v161
    %v163 = vpop.f32.mrf.mxu0
    %164 = vmatprep.mubr.f32.mxu0 0.0
    %165 = vmatmul.mubr.f32.gmra.mxu0 %v81
    %v166 = vpop.f32.mrf.mxu0
    %v167 = vadd.f32 %v71, %v166
    %v168 = vpop.f32.mrf.mxu0
    %169 = vmatprep.mubr.f32.mxu0 0.0
    %170 = vmatmul.mubr.f32.gmra.mxu0 %v84
    %v171 = vpop.f32.mrf.mxu0
    %v172 = vadd.f32 %v72, %v171
    %v173 = vpop.f32.mrf.mxu0
    %174 = vdwg.mxu0
    %v175 = vld [vmem:[%s4] sm:$0xff]
    %v176 = vld [vmem:[%s4 + $0x8] sm:$0xff]
    %v177 = vld [vmem:[%s4 + $0x10] sm:$0xff]
    %v178 = vld [vmem:[%s4 + $0x18] sm:$0xff]
    %180 = vset.pattern.permute.xlu0 0
    %181 = vperm.xlu0 %180, %v175
    %v182 = vpop.permute.xlu0 %181
    %185 = vset.pattern.permute.xlu0 0
    %186 = vperm.xlu0 %185, %v176
    %v187 = vpop.permute.xlu0 %186
    %190 = vset.pattern.permute.xlu0 0
    %191 = vperm.xlu0 %190, %v177
    %v192 = vpop.permute.xlu0 %191
    %195 = vset.pattern.permute.xlu0 0
    %196 = vperm.xlu0 %195, %v178
    %v197 = vpop.permute.xlu0 %196
    %v199 = vadd.f32 %v157, %v182
    %v200 = vadd.f32 %v162, %v187
    %v201 = vadd.f32 %v167, %v192
    %v202 = vadd.f32 %v172, %v197
    %v203 = vtanh.pop %v199
    %v204 = vtanh.pop %v200
    %v205 = vtanh.pop %v201
    %v206 = vtanh.pop %v202
    %v207 = vld [vmem:[%s5] sm:$0xff]
    %v208 = vld [vmem:[%s5 + $0x8] sm:$0xff]
    %v209 = vld [vmem:[%s5 + $0x10] sm:$0xff]
    %v210 = vld [vmem:[%s5 + $0x18] sm:$0xff]
    %v211 = vld [vmem:[%s6] sm:$0xff]
    %v212 = vld [vmem:[%s6 + $0x8] sm:$0xff]
    %v213 = vld [vmem:[%s6 + $0x10] sm:$0xff]
    %v214 = vld [vmem:[%s6 + $0x18] sm:$0xff]
    %216 = vset.pattern.permute.xlu0 0
    %217 = vperm.xlu0 %216, %v211
    %v218 = vpop.permute.xlu0 %217
    %221 = vset.pattern.permute.xlu0 0
    %222 = vperm.xlu0 %221, %v212
    %v223 = vpop.permute.xlu0 %222
    %226 = vset.pattern.permute.xlu0 0
    %227 = vperm.xlu0 %226, %v213
    %v228 = vpop.permute.xlu0 %227
    %231 = vset.pattern.permute.xlu0 0
    %232 = vperm.xlu0 %231, %v214
    %v233 = vpop.permute.xlu0 %232
    %vm235 = vcmask 261120
    %v237 = vsel %vm235, %v207, 0
    %v240 = vsel %vm235, %v208, 0
    %v243 = vsel %vm235, %v209, 0
    %v246 = vsel %vm235, %v210, 0
    %248 = vmatprep.subr.mxu0 0.0
    %249 = vmatpush1.msra.mxu0 0.0
    %250 = vmatprep.subr.mxu0 0.0
    %251 = vmatpush1.msra.mxu0 0.0
    %252 = vmatprep.subr.mxu0 0.0
    %253 = vmatpush1.msra.mxu0 0.0
    %254 = vmatprep.subr.mxu0 0.0
    %255 = vmatpush1.msra.mxu0 0.0
    %256 = vmatprep.subr.mxu0 0.0
    %257 = vmatpush1.msra.mxu0 0.0
    %258 = vmatprep.subr.mxu0 0.0
    %259 = vmatpush1.msra.mxu0 0.0
    %260 = vmatprep.subr.mxu0 0.0
    %261 = vmatpush1.msra.mxu0 0.0
    %262 = vmatprep.subr.mxu0 0.0
    %263 = vmatpush1.msra.mxu0 0.0
    %264 = vmatprep.subr.mxu0 0.0
    %265 = vmatpush1.msra.mxu0 0.0
    %266 = vmatprep.subr.mxu0 0.0
    %267 = vmatpush1.msra.mxu0 0.0
    %268 = vmatprep.subr.mxu0 0.0
    %269 = vmatpush1.msra.mxu0 0.0
    %270 = vmatprep.subr.mxu0 0.0
    %271 = vmatpush1.msra.mxu0 0.0
    %272 = vmatprep.subr.mxu0 0.0
    %273 = vmatpush1.msra.mxu0 %v206
    %274 = vmatprep.subr.mxu0 0.0
    %275 = vmatpush1.msra.mxu0 %v205
    %276 = vmatprep.subr.mxu0 0.0
    %277 = vmatpush1.msra.mxu0 %v204
    %278 = vmatprep.subr.mxu0 0.0
    %279 = vmatpush1.msra.mxu0 %v203
    %280 = vmatprep.subr.mxu0 0.0
    %281 = vmatpush2.msra.mxu0 0.0
    %282 = vmatprep.subr.mxu0 0.0
    %283 = vmatpush2.msra.mxu0 0.0
    %284 = vmatprep.subr.mxu0 0.0
    %285 = vmatpush2.msra.mxu0 0.0
    %286 = vmatprep.subr.mxu0 0.0
    %287 = vmatpush2.msra.mxu0 0.0
    %288 = vmatprep.subr.mxu0 0.0
    %289 = vmatpush2.msra.mxu0 0.0
    %290 = vmatprep.subr.mxu0 0.0
    %291 = vmatpush2.msra.mxu0 0.0
    %292 = vmatprep.subr.mxu0 0.0
    %293 = vmatpush2.msra.mxu0 0.0
    %294 = vmatprep.subr.mxu0 0.0
    %295 = vmatpush2.msra.mxu0 0.0
    %296 = vmatprep.subr.mxu0 0.0
    %297 = vmatpush2.msra.mxu0 0.0
    %298 = vmatprep.subr.mxu0 0.0
    %299 = vmatpush2.msra.mxu0 0.0
    %300 = vmatprep.subr.mxu0 0.0
    %301 = vmatpush2.msra.mxu0 0.0
    %302 = vmatprep.subr.mxu0 0.0
    %303 = vmatpush2.msra.mxu0 0.0
    %304 = vmatprep.subr.mxu0 0.0
    %305 = vmatpush2.msra.mxu0 0.0
    %306 = vmatprep.subr.mxu0 0.0
    %307 = vmatpush2.msra.mxu0 0.0
    %308 = vmatprep.subr.mxu0 0.0
    %309 = vmatpush2.msra.mxu0 0.0
    %310 = vmatprep.subr.mxu0 0.0
    %311 = vmatpush2.msra.mxu0 0.0
    %312 = vmatprep.mubr.f32.mxu0 0.0
    %313 = vmatmul.mubr.f32.gmra.mxu0 %v237
    %v314 = vpop.f32.mrf.mxu0
    %v315 = vadd.f32 %v218, %v314
    %v316 = vpop.f32.mrf.mxu0
    %317 = vmatprep.mubr.f32.mxu0 0.0
    %318 = vmatmul.mubr.f32.gmra.mxu0 %v240
    %v319 = vpop.f32.mrf.mxu0
    %v320 = vadd.f32 %v223, %v319
    %v321 = vpop.f32.mrf.mxu0
    %322 = vmatprep.mubr.f32.mxu0 0.0
    %323 = vmatmul.mubr.f32.gmra.mxu0 %v243
    %v324 = vpop.f32.mrf.mxu0
    %v325 = vadd.f32 %v228, %v324
    %v326 = vpop.f32.mrf.mxu0
    %327 = vmatprep.mubr.f32.mxu0 0.0
    %328 = vmatmul.mubr.f32.gmra.mxu0 %v246
    %v329 = vpop.f32.mrf.mxu0
    %v330 = vadd.f32 %v233, %v329
    %v331 = vpop.f32.mrf.mxu0
    %332 = vdwg.mxu0
    %v333 = vtanh.pop %v315
    %v334 = vtanh.pop %v320
    %v335 = vtanh.pop %v325
    %v336 = vtanh.pop %v330
    %v337 = vld [vmem:[%s7] sm:$0xf]
    %v338 = vld [vmem:[%s8] sm:$0xf]
    %340 = vset.pattern.permute.xlu0 0
    %341 = vperm.xlu0 %340, %v338
    %v342 = vpop.permute.xlu0 %341
    %v345 = vsel %vm235, %v337, 0
    %347 = vmatprep.subr.mxu0 0.0
    %348 = vmatpush1.msra.mxu0 0.0
    %349 = vmatprep.subr.mxu0 0.0
    %350 = vmatpush1.msra.mxu0 0.0
    %351 = vmatprep.subr.mxu0 0.0
    %352 = vmatpush1.msra.mxu0 0.0
    %353 = vmatprep.subr.mxu0 0.0
    %354 = vmatpush1.msra.mxu0 0.0
    %355 = vmatprep.subr.mxu0 0.0
    %356 = vmatpush1.msra.mxu0 0.0
    %357 = vmatprep.subr.mxu0 0.0
    %358 = vmatpush1.msra.mxu0 0.0
    %359 = vmatprep.subr.mxu0 0.0
    %360 = vmatpush1.msra.mxu0 0.0
    %361 = vmatprep.subr.mxu0 0.0
    %362 = vmatpush1.msra.mxu0 0.0
    %363 = vmatprep.subr.mxu0 0.0
    %364 = vmatpush1.msra.mxu0 0.0
    %365 = vmatprep.subr.mxu0 0.0
    %366 = vmatpush1.msra.mxu0 0.0
    %367 = vmatprep.subr.mxu0 0.0
    %368 = vmatpush1.msra.mxu0 0.0
    %369 = vmatprep.subr.mxu0 0.0
    %370 = vmatpush1.msra.mxu0 0.0
    %371 = vmatprep.subr.mxu0 0.0
    %372 = vmatpush1.msra.mxu0 %v336
    %373 = vmatprep.subr.mxu0 0.0
    %374 = vmatpush1.msra.mxu0 %v335
    %375 = vmatprep.subr.mxu0 0.0
    %376 = vmatpush1.msra.mxu0 %v334
    %377 = vmatprep.subr.mxu0 0.0
    %378 = vmatpush1.msra.mxu0 %v333
    %379 = vmatprep.subr.mxu0 0.0
    %380 = vmatpush2.msra.mxu0 0.0
    %381 = vmatprep.subr.mxu0 0.0
    %382 = vmatpush2.msra.mxu0 0.0
    %383 = vmatprep.subr.mxu0 0.0
    %384 = vmatpush2.msra.mxu0 0.0
    %385 = vmatprep.subr.mxu0 0.0
    %386 = vmatpush2.msra.mxu0 0.0
    %387 = vmatprep.subr.mxu0 0.0
    %388 = vmatpush2.msra.mxu0 0.0
    %389 = vmatprep.subr.mxu0 0.0
    %390 = vmatpush2.msra.mxu0 0.0
    %391 = vmatprep.subr.mxu0 0.0
    %392 = vmatpush2.msra.mxu0 0.0
    %393 = vmatprep.subr.mxu0 0.0
    %394 = vmatpush2.msra.mxu0 0.0
    %395 = vmatprep.subr.mxu0 0.0
    %396 = vmatpush2.msra.mxu0 0.0
    %397 = vmatprep.subr.mxu0 0.0
    %398 = vmatpush2.msra.mxu0 0.0
    %399 = vmatprep.subr.mxu0 0.0
    %400 = vmatpush2.msra.mxu0 0.0
    %401 = vmatprep.subr.mxu0 0.0
    %402 = vmatpush2.msra.mxu0 0.0
    %403 = vmatprep.subr.mxu0 0.0
    %404 = vmatpush2.msra.mxu0 0.0
    %405 = vmatprep.subr.mxu0 0.0
    %406 = vmatpush2.msra.mxu0 0.0
    %407 = vmatprep.subr.mxu0 0.0
    %408 = vmatpush2.msra.mxu0 0.0
    %409 = vmatprep.subr.mxu0 0.0
    %410 = vmatpush2.msra.mxu0 0.0
    %411 = vmatprep.mubr.f32.mxu0 0.0
    %412 = vmatmul.mubr.f32.gmra.mxu0 %v345
    %v413 = vpop.f32.mrf.mxu0
    %v414 = vadd.f32 %v342, %v413
    %v415 = vpop.f32.mrf.mxu0
    %416 = vdwg.mxu0
    %417 = vst [vmem:[#allocation2] sm:$0xf] %v414
    // Predicated region
    $region38: #{mlp_grad_forward.1} parent=1 // pred_check
      _
    $region39: #{mlp_grad_forward.1} parent=1 // pred_check_branch
      %419 = sbr.rel (0) target = $region41
    $region40: #{mlp_grad_forward.1} parent=1 // pred_region
      %s421 = ssub.s32 64, 64
      %422 = vsyncadd [#allocation3], %s421
      %s424 = sshll.u32 [#allocation2], 4
      %s425 = int_to_ptr.vmem [resolvable:$true] %s424
      %427 = dma.vmem_to_hbm [thread:$0]  %s425, 64, %s9, [#allocation3]
    $region41: #{mlp_grad_forward.1} parent=1 // pred_fallthru
      _
    // Predicated region
    $region42: #{mlp_grad_forward.1} parent=1 // pred_check
      _
    $region43: #{mlp_grad_forward.1} parent=1 // pred_check_branch
      %429 = sbr.rel (0) target = $region45
    $region44: #{mlp_grad_forward.1} parent=1 // pred_region
      %430 = dma.done [#allocation3], 64
    $region45: #{mlp_grad_forward.1} parent=1 // pred_fallthru
      _
    %431 = vsyncpa [#allocation3], 1

</llo_original>
